<compile_context>
chip_gen: v7x
topology: tpu7x:2x2x1
jax: 0.10.0
libtpu: 0.0.40
codegen_flags: <defaults>
</compile_context>

<pallas_src>
import jax
import jax.numpy as jnp
from jax.experimental import pallas as pl
from jax.experimental.pallas import tpu as pltpu


def _comb_ranker_kernel(ht_ref, hc_ref, hp_ref, v_ref, c_ref, o_ref):
    """[TB, H] native-dtype activation tiles -> [TB, 1] f32 scores."""
    f32 = jnp.float32
    # In-kernel upcast (free VPU work); [TB,H] * [1,H] broadcasts on the VPU.
    s = (ht_ref[...].astype(f32) * v_ref[0:1, :]
         + hc_ref[...].astype(f32) * v_ref[1:2, :]
         + hp_ref[...].astype(f32) * v_ref[2:3, :])
    # Lane reduce on the XLU; c_ref holds the folded scalar bias in SMEM.
    o_ref[...] = jnp.sum(s, axis=-1, keepdims=True) + c_ref[0]


def _pick_batch_tile(B, H, itemsize, *, tile_budget_bytes=16 << 20, cap=4096):
    """Rows per grid step: sublane aligned, VMEM-budgeted, >=2 steps if possible."""
    align = max(8, 32 // itemsize)        # 8 (f32) / 16 (bf16) / 32 (int8) sublanes
    if B <= align:
        return B                          # single full-array block
    # 3 streamed inputs x 2 pipeline buffers must fit the tile budget.
    rows = tile_budget_bytes // (3 * 2 * H * itemsize)
    rows = max(align, min(rows, cap))
    # v7x megacore: make sure the "parallel" axis has at least 2 grid steps.
    half = -(-B // 2)                     # cdiv(B, 2)
    half = -(-half // align) * align      # round up to sublane alignment
    rows = min(rows, half)
    rows = max(align, (rows // align) * align)
    return min(rows, B)


@jax.jit
def tri_attn_comb_path_ranker(h_text, h_con, h_path, w1, w2, w3, w_out, bias):
    """Pallas implementation of TriAttnCombPathRanker.forward."""
    B, H = h_text.shape
    f32 = jnp.float32
    act_dtype = h_text.dtype
    h_con = h_con.astype(act_dtype)
    h_path = h_path.astype(act_dtype)
    itemsize = jnp.dtype(act_dtype).itemsize

    # ---- batch-independent algebraic fold (done once, in pure f32) ---------
    # (x @ W + bias) @ w_out == x @ (W @ w_out) + bias * sum(w_out)
    wo = w_out.astype(f32)[:, 0]                                   # [H]
    v1 = jnp.sum(w1.astype(f32) * wo[None, :], axis=1)             # [H]
    v2 = jnp.sum(w2.astype(f32) * wo[None, :], axis=1)             # [H]
    v3 = jnp.sum(w3.astype(f32) * wo[None, :], axis=1)             # [H]
    vpack = (jnp.zeros((8, H), f32)                                # sublane-aligned
             .at[0].set(v1).at[1].set(v2).at[2].set(v3))
    c = (bias.astype(f32)[0] * jnp.sum(wo)).reshape(1)             # folded bias

    # ---- batch tiling -------------------------------------------------------
    tb = _pick_batch_tile(B, H, itemsize)
    grid = (pl.cdiv(B, tb),)

    cost = pl.CostEstimate(
        flops=6 * B * H,
        transcendentals=0,
        bytes_accessed=int(3 * B * H * itemsize + 8 * H * 4 + B * 4),
    )

    return pl.pallas_call(
        _comb_ranker_kernel,
        out_shape=jax.ShapeDtypeStruct((B, 1), f32),
        grid=grid,
        in_specs=[
            pl.BlockSpec((tb, H), lambda i: (i, 0)),             # h_text tile
            pl.BlockSpec((tb, H), lambda i: (i, 0)),             # h_con tile
            pl.BlockSpec((tb, H), lambda i: (i, 0)),             # h_path tile
            pl.BlockSpec((8, H), lambda i: (0, 0)),              # folded vectors (resident)
            pl.BlockSpec(memory_space=pltpu.MemorySpace.SMEM),   # folded bias scalar
        ],
        out_specs=pl.BlockSpec((tb, 1), lambda i: (i, 0)),
        compiler_params=pltpu.CompilerParams(
            dimension_semantics=("parallel",),                   # shards across TCs on v7x
            vmem_limit_bytes=32 * 1024 * 1024,                   # safe on v5e/v6e/v7x
        ),
        cost_estimate=cost,
    )(h_text, h_con, h_path, vpack, c)


def _xavier_uniform(key, shape, dtype=jnp.float32):
    fan_in, fan_out = shape[0], shape[1]
    limit = jnp.sqrt(6.0 / (fan_in + fan_out))
    return jax.random.uniform(key, shape, dtype, minval=-limit, maxval=limit)


def _reference(h_text, h_con, h_path, w1, w2, w3, w_out, bias):
    # Unfolded f32 reference matching the PyTorch module exactly.
    f32 = jnp.float32
    hi = jax.lax.Precision.HIGHEST
    res = (jnp.matmul(h_text.astype(f32), w1.astype(f32), precision=hi)
           + jnp.matmul(h_con.astype(f32), w2.astype(f32), precision=hi)
           + jnp.matmul(h_path.astype(f32), w3.astype(f32), precision=hi)
           + bias.astype(f32))
    return jnp.matmul(res, w_out.astype(f32), precision=hi)


def _run_case(seed, B, H, act_dtype, atol, rtol):
    key = jax.random.PRNGKey(0)
    key = jax.random.fold_in(key, seed)
    k_t, k_c, k_p, k1, k2, k3, k4 = jax.random.split(key, 7)

    h_text = jax.random.normal(k_t, (B, H), jnp.float32).astype(act_dtype)
    h_con = jax.random.normal(k_c, (B, H), jnp.float32).astype(act_dtype)
    h_path = jax.random.normal(k_p, (B, H), jnp.float32).astype(act_dtype)

    w1 = _xavier_uniform(k1, (H, H))
    w2 = _xavier_uniform(k2, (H, H))
    w3 = _xavier_uniform(k3, (H, H))
    w_out = _xavier_uniform(k4, (H, 1))
    # Module initializes bias to 0; use a nonzero value to exercise the path.
    bias = jnp.full((1,), 0.25, jnp.float32)

    out = tri_attn_comb_path_ranker(h_text, h_con, h_path,
                                    w1, w2, w3, w_out, bias)
    out = jax.block_until_ready(out)

    ref = _reference(h_text, h_con, h_path, w1, w2, w3, w_out, bias)
    assert out.shape == (B, 1), out.shape
    assert jnp.allclose(out, ref, atol=atol, rtol=rtol), (
        f"mismatch B={B} H={H} dtype={act_dtype}",
        jnp.max(jnp.abs(out - ref)))


if __name__ == "__main__":
    # Primary small case matching the module spec (f32, single block).
    _run_case(seed=0, B=8, H=32, act_dtype=jnp.float32, atol=1e-3, rtol=1e-3)
    # Multi-step grid with a masked tail block (f32).
    _run_case(seed=1, B=37, H=64, act_dtype=jnp.float32, atol=1e-3, rtol=1e-3)
    # Native bf16 activations streamed directly, upcast in-kernel.
    _run_case(seed=2, B=48, H=64, act_dtype=jnp.bfloat16, atol=5e-3, rtol=5e-3)

    print("KERNEL_OK")
</pallas_src>

<mosaic_0001>
module attributes {stable_mosaic.version = 11 : i64} {
  func.func @_comb_ranker_kernel(%arg0: i32, %arg1: memref<8x32xf32, #tpu.memory_space<vmem>>, %arg2: memref<8x32xf32, #tpu.memory_space<vmem>>, %arg3: memref<8x32xf32, #tpu.memory_space<vmem>>, %arg4: memref<8x32xf32, #tpu.memory_space<vmem>>, %arg5: memref<1xf32, #tpu.memory_space<smem>>, %arg6: memref<8x1xf32, #tpu.memory_space<vmem>>) attributes {dimension_semantics = [#tpu.dimension_semantics<parallel>], iteration_bounds = array<i64: 1>, scalar_prefetch = 0 : i64, scratch_operands = 0 : i64, tpu.core_type = #tpu.core_type<tc>, window_params = [{transform_indices = @transform_0, window_bounds = array<i64: 8, 32>}, {transform_indices = @transform_1, window_bounds = array<i64: 8, 32>}, {transform_indices = @transform_2, window_bounds = array<i64: 8, 32>}, {pipeline_mode = #tpu.pipeline_mode<synchronous>, transform_indices = @transform_3, window_bounds = array<i64: 8, 32>}, {transform_indices = @transform_4, window_bounds = array<i64: 1>}, {transform_indices = @transform_5, window_bounds = array<i64: 8, 1>}]} {
    %c0 = arith.constant 0 : index
    %c0_0 = arith.constant 0 : index
    %0 = vector.load %arg1[%c0, %c0_0] : memref<8x32xf32, #tpu.memory_space<vmem>>, vector<8x32xf32>
    %c0_1 = arith.constant 0 : index
    %c0_2 = arith.constant 0 : index
    %1 = vector.load %arg4[%c0_1, %c0_2] : memref<8x32xf32, #tpu.memory_space<vmem>>, vector<1x32xf32>
    %2 = vector.broadcast %1 : vector<1x32xf32> to vector<8x32xf32>
    %3 = arith.mulf %0, %2 : vector<8x32xf32>
    %c0_3 = arith.constant 0 : index
    %c0_4 = arith.constant 0 : index
    %4 = vector.load %arg2[%c0_3, %c0_4] : memref<8x32xf32, #tpu.memory_space<vmem>>, vector<8x32xf32>
    %c1 = arith.constant 1 : index
    %c0_5 = arith.constant 0 : index
    %5 = vector.load %arg4[%c1, %c0_5] : memref<8x32xf32, #tpu.memory_space<vmem>>, vector<1x32xf32>
    %6 = vector.broadcast %5 : vector<1x32xf32> to vector<8x32xf32>
    %7 = arith.mulf %4, %6 : vector<8x32xf32>
    %8 = arith.addf %3, %7 : vector<8x32xf32>
    %c0_6 = arith.constant 0 : index
    %c0_7 = arith.constant 0 : index
    %9 = vector.load %arg3[%c0_6, %c0_7] : memref<8x32xf32, #tpu.memory_space<vmem>>, vector<8x32xf32>
    %c2 = arith.constant 2 : index
    %c0_8 = arith.constant 0 : index
    %10 = vector.load %arg4[%c2, %c0_8] : memref<8x32xf32, #tpu.memory_space<vmem>>, vector<1x32xf32>
    %11 = vector.broadcast %10 : vector<1x32xf32> to vector<8x32xf32>
    %12 = arith.mulf %9, %11 : vector<8x32xf32>
    %13 = arith.addf %8, %12 : vector<8x32xf32>
    %cst = arith.constant dense<0.000000e+00> : vector<8xf32>
    %14 = vector.multi_reduction <add>, %13, %cst [1] : vector<8x32xf32> to vector<8xf32>
    %15 = vector.shape_cast %14 : vector<8xf32> to vector<8x1xf32>
    %c0_9 = arith.constant 0 : index
    %16 = memref.load %arg5[%c0_9] : memref<1xf32, #tpu.memory_space<smem>>
    %17 = vector.broadcast %16 : f32 to vector<8x1xf32>
    %18 = arith.addf %15, %17 : vector<8x1xf32>
    %c0_10 = arith.constant 0 : index
    %c0_11 = arith.constant 0 : index
    %19 = vector.load %arg6[%c0_10, %c0_11] : memref<8x1xf32, #tpu.memory_space<vmem>>, vector<8x1xf32>
    tpu.vector_store %arg6[%c0_10, %c0_11], %18 {strides = array<i32>} : memref<8x1xf32, #tpu.memory_space<vmem>>, vector<8x1xf32>,
    return
  }
  func.func @transform_0(%arg0: i32) -> (i32, i32) {
    %c0_i32 = arith.constant 0 : i32
    %c0_i32_0 = arith.constant 0 : i32
    return %arg0, %c0_i32 : i32, i32
  }
  func.func @transform_1(%arg0: i32) -> (i32, i32) {
    %c0_i32 = arith.constant 0 : i32
    %c0_i32_0 = arith.constant 0 : i32
    return %arg0, %c0_i32 : i32, i32
  }
  func.func @transform_2(%arg0: i32) -> (i32, i32) {
    %c0_i32 = arith.constant 0 : i32
    %c0_i32_0 = arith.constant 0 : i32
    return %arg0, %c0_i32 : i32, i32
  }
  func.func @transform_3(%arg0: i32) -> (i32, i32) {
    %c0_i32 = arith.constant 0 : i32
    %c0_i32_0 = arith.constant 0 : i32
    %c0_i32_1 = arith.constant 0 : i32
    return %c0_i32, %c0_i32_0 : i32, i32
  }
  func.func @transform_4(%arg0: i32) -> i32 {
    %c0_i32 = arith.constant 0 : i32
    %c0_i32_0 = arith.constant 0 : i32
    return %c0_i32 : i32
  }
  func.func @transform_5(%arg0: i32) -> (i32, i32) {
    %c0_i32 = arith.constant 0 : i32
    %c0_i32_0 = arith.constant 0 : i32
    return %arg0, %c0_i32 : i32, i32
  }
}

</mosaic_0001>

<llo_original>
// kernel: tri_attn_comb_path_ranker.1
$region0: #{tri_attn_comb_path_ranker.1}
  #allocation0 [shape = 'u32[]', space=smem, size = 0x4, offset = 0x4, fixed_abs, tag = 'smem constant byte address 0x4 - core index']
  #allocation1 [shape = 'u32[144,128]{1,0:T(1,128)}', space=vmem, size = 0x12000, scoped, tag = 'internal scratch']
  #allocation2 [shape = 'f32[1]{0:T(128)S(6)}', space=smem, size = 0x200, scoped, tag = 'scoped memory for tri_attn_comb_path_ranker.1']
  %s0 = inlined_call_operand.vmem [shape: f32[8,32], index: 0, kind: input, shape index: {}]
  %s1 = inlined_call_operand.vmem [shape: f32[8,32], index: 1, kind: input, shape index: {}]
  %s2 = inlined_call_operand.vmem [shape: f32[8,32], index: 2, kind: input, shape index: {}]
  %s3 = inlined_call_operand.vmem [shape: f32[8,32], index: 3, kind: input, shape index: {}]
  %s4 = inlined_call_operand.<no memory space> [shape: f32[1], index: 4, kind: input, shape index: {}]
  %s5 = inlined_call_operand.vmem [shape: f32[8,1], index: 5, kind: output, shape index: {}]
  %s6 = sld [smem:[#allocation0]]
  $region30: #{tri_attn_comb_path_ranker.1} parent=0
    _
  %s8 = ssub.s32 1, %s6
  %s9 = scalar_select 0, %s8, %s6
  %10 = sst [smem:[#allocation2]] %s4
  // Predicated region
  $region2: #{tri_attn_comb_path_ranker.1} parent=0 // pred_check
    _
  $region3: #{tri_attn_comb_path_ranker.1} parent=0 // pred_check_branch
    %12 = sbr.rel (0) target = $region5
  $region4: #{tri_attn_comb_path_ranker.1} parent=0 // pred_region
    _
  $region5: #{tri_attn_comb_path_ranker.1} parent=0 // pred_fallthru
    _
  // Predicated region
  $region6: #{tri_attn_comb_path_ranker.1} parent=0 // pred_check
    _
  $region7: #{tri_attn_comb_path_ranker.1} parent=0 // pred_check_branch
    %14 = sbr.rel (0) target = $region9
  $region8: #{tri_attn_comb_path_ranker.1} parent=0 // pred_region
    _
  $region9: #{tri_attn_comb_path_ranker.1} parent=0 // pred_fallthru
    _
  // Predicated region
  $region10: #{tri_attn_comb_path_ranker.1} parent=0 // pred_check
    _
  $region11: #{tri_attn_comb_path_ranker.1} parent=0 // pred_check_branch
    %16 = sbr.rel (0) target = $region13
  $region12: #{tri_attn_comb_path_ranker.1} parent=0 // pred_region
    _
  $region13: #{tri_attn_comb_path_ranker.1} parent=0 // pred_fallthru
    _
  // Predicated region
  $region14: #{tri_attn_comb_path_ranker.1} parent=0 // pred_check
    _
  $region15: #{tri_attn_comb_path_ranker.1} parent=0 // pred_check_branch
    %18 = sbr.rel (0) target = $region17
  $region16: #{tri_attn_comb_path_ranker.1} parent=0 // pred_region
    _
  $region17: #{tri_attn_comb_path_ranker.1} parent=0 // pred_fallthru
    _
  // Predicated region
  $region18: #{tri_attn_comb_path_ranker.1} parent=0 // pred_check
    _
  $region19: #{tri_attn_comb_path_ranker.1} parent=0 // pred_check_branch
    %20 = sbr.rel (0) target = $region21
  $region20: #{tri_attn_comb_path_ranker.1} parent=0 // pred_region
    _
  $region21: #{tri_attn_comb_path_ranker.1} parent=0 // pred_fallthru
    _
  %v21 = vld [vmem:[%s0] sm:$0xff]
  %v22 = vld [vmem:[%s3] sm:$0x1]
  %v23 = vlaneseq
  %v24 = vshrl.u32 %v23, 7
  %v25 = vsub.s32 0, %v24
  %v26 = vrot.slane %v22, %v25
  %v27 = vmul.f32 %v21, %v26
  %v28 = vld [vmem:[%s1] sm:$0xff]
  %v29 = vld [vmem:[%s3 + $0x1] sm:$0x1]
  %v30 = vlaneseq
  %v31 = vshrl.u32 %v30, 7
  %v32 = vsub.s32 0, %v31
  %v33 = vrot.slane %v29, %v32
  %v34 = vmul.f32 %v28, %v33
  %v35 = vadd.f32 %v27, %v34
  %v36 = vld [vmem:[%s2] sm:$0xff]
  %v37 = vld [vmem:[%s3 + $0x2] sm:$0x1]
  %v38 = vlaneseq
  %v39 = vshrl.u32 %v38, 7
  %v40 = vsub.s32 0, %v39
  %v41 = vrot.slane %v37, %v40
  %v42 = vmul.f32 %v36, %v41
  %v43 = vadd.f32 %v35, %v42
  %vm44 = vcmask 261120
  %v45 = vsel %vm44, %v43, 0.0
  %46 = vadd.xlane.f32.xlu0 %v45
  %v47 = vpop.xlane.xlu0 %46
  %s48 = sld [smem:[#allocation2]]
  %v49 = vstv %s48
  %v50 = vadd.f32 %v47, %v49
  %vm51 = vcmask 7168
  %52 = vst.msk [vmem:[%s5] sm:$0xff] %vm51, %v50
  // Predicated region
  $region22: #{tri_attn_comb_path_ranker.1} parent=0 // pred_check
    _
  $region23: #{tri_attn_comb_path_ranker.1} parent=0 // pred_check_branch
    %54 = sbr.rel (0) target = $region25
  $region24: #{tri_attn_comb_path_ranker.1} parent=0 // pred_region
    _
  $region25: #{tri_attn_comb_path_ranker.1} parent=0 // pred_fallthru
    _
  // Predicated region
  $region26: #{tri_attn_comb_path_ranker.1} parent=0 // pred_check
    _
  $region27: #{tri_attn_comb_path_ranker.1} parent=0 // pred_check_branch
    %56 = sbr.rel (0) target = $region29
  $region28: #{tri_attn_comb_path_ranker.1} parent=0 // pred_region
    _
  $region29: #{tri_attn_comb_path_ranker.1} parent=0 // pred_fallthru
    _

</llo_original>
